<compile_context>
chip_gen: v7x
topology: tpu7x:2x2x1
jax: 0.10.0
libtpu: 0.0.40
codegen_flags: <defaults>
</compile_context>

<pallas_src>
import functools

import jax
import jax.numpy as jnp
from jax.experimental import pallas as pl
from jax.experimental.pallas import tpu as pltpu


LANE = 128


def _round_up(x, m):
    return ((x + m - 1) // m) * m


def _softmax_last(logits):
    """Numerically-stable softmax over the last axis; EUP reciprocal, no divide."""
    m = jnp.max(logits, axis=-1, keepdims=True)
    e = jnp.exp(logits - m)
    s = jnp.sum(e, axis=-1, keepdims=True)
    return e * pl.reciprocal(s, approx=True)


def _attn_kernel(x_ref, wqkv_ref, bqkv_ref, wo_ref, bo_ref, o_ref, *,
                 heads: int, hdp: int):
    """One grid step = one batch element (N rows, lane-padded to CP columns)."""
    hw = heads * hdp                      # width of one projection (multiple of 128)

    # clamp like torch.clamp(x, -1e4, 1e4) in f32, then feed the MXU bf16.
    x = jnp.clip(x_ref[...], -10000.0, 10000.0)
    xb = x.astype(jnp.bfloat16)

    # Fused q/k/v projection: one bf16 MXU push, f32 accumulation, f32 bias.
    # q columns/bias already carry the attention scale (folded at prep time).
    qkv = jnp.dot(xb, wqkv_ref[...],
                  preferred_element_type=jnp.float32) + bqkv_ref[...]

    # Slices at multiples of 128 lanes -> lane-tile aligned, no relayout copies.
    q = qkv[:, 0 * hw:1 * hw]
    k = qkv[:, 1 * hw:2 * hw]
    v = qkv[:, 2 * hw:3 * hw]

    if heads == 1:
        # Plain 2-D matmuls, contraction over the (padded, zero-extended)
        # 128-wide head dim -- exact, since padding columns are zero.
        logits = jnp.einsum('nd,md->nm', q, k,
                            preferred_element_type=jnp.float32)
        probs = _softmax_last(logits)
        out = jnp.einsum('nm,md->nd', probs, v,
                         preferred_element_type=jnp.float32)
    else:
        n = q.shape[0]
        # One explicit relayout to (heads, N, hdp); einsums then contract on
        # minor dims only (no hidden per-einsum transposes).
        qh = q.reshape(n, heads, hdp).transpose(1, 0, 2)
        kh = k.reshape(n, heads, hdp).transpose(1, 0, 2)
        vh = v.reshape(n, heads, hdp).transpose(1, 0, 2)
        logits = jnp.einsum('hnd,hmd->hnm', qh, kh,
                            preferred_element_type=jnp.float32)
        probs = _softmax_last(logits)
        outh = jnp.einsum('hnm,hmd->hnd', probs, vh,
                          preferred_element_type=jnp.float32)
        out = outh.transpose(1, 0, 2).reshape(n, heads * hdp)

    # PyTorch: out = out.to(bfloat16); out_proj(out).  Keep out in bf16 and do
    # a single-pass bf16 x bf16 MXU matmul with f32 accumulation + f32 bias.
    out_b = out.astype(jnp.bfloat16)
    res = jnp.dot(out_b, wo_ref[...],
                  preferred_element_type=jnp.float32) + bo_ref[...]
    o_ref[...] = res.astype(o_ref.dtype)          # full (N, CP) unmasked store


def prepare_params(params, heads=1):
    """One-time weight prep (hoisted out of the per-call path).

    Builds lane-padded, head-slab-aligned, bf16 MXU operands:
      w_qkv : (CP, 3*heads*HDP) bf16   (q | k | v slabs, q pre-scaled)
      b_qkv : (1, 3*heads*HDP)  f32
      wo    : (heads*HDP, CP)   bf16
      bo    : (1, CP)           f32
    """
    C = params['wq'].shape[0]
    assert C % heads == 0
    hd = C // heads
    hdp = _round_up(hd, LANE)
    cp = _round_up(C, LANE)
    scale = float(hd) ** (-0.5)

    def pad_proj(w, b, s=1.0):
        wt = params_dtype(w).T * s                      # (in=C, out=C)
        wt = wt.reshape(C, heads, hd)
        wt = jnp.pad(wt, ((0, cp - C), (0, 0), (0, hdp - hd)))
        bt = (params_dtype(b) * s).reshape(heads, hd)
        bt = jnp.pad(bt, ((0, 0), (0, hdp - hd)))
        return wt.reshape(cp, heads * hdp), bt.reshape(heads * hdp)

    def params_dtype(a):
        return jnp.asarray(a, jnp.float32)

    wq, bq = pad_proj(params['wq'], params['bq'], scale)   # scale folded (exact)
    wk, bk = pad_proj(params['wk'], params['bk'])
    wv, bv = pad_proj(params['wv'], params['bv'])

    w_qkv = jnp.concatenate([wq, wk, wv], axis=1).astype(jnp.bfloat16)
    b_qkv = jnp.concatenate([bq, bk, bv]).reshape(1, 3 * heads * hdp)
    b_qkv = b_qkv.astype(jnp.float32)

    wo_t = params_dtype(params['wo']).T.reshape(heads, hd, C)
    wo_t = jnp.pad(wo_t, ((0, 0), (0, hdp - hd), (0, cp - C)))
    wo_pad = wo_t.reshape(heads * hdp, cp).astype(jnp.bfloat16)
    bo = jnp.pad(params_dtype(params['bo']), (0, cp - C)).reshape(1, cp)
    bo = bo.astype(jnp.float32)

    return dict(w_qkv=w_qkv, b_qkv=b_qkv, wo=wo_pad, bo=bo,
                C=C, CP=cp, HDP=hdp, heads=heads)


def light_self_attention(x, prepared):
    """x: (B, N, C) float32.  prepared: output of prepare_params()."""
    B, N, C = x.shape
    assert C == prepared['C']
    heads, cp, hdp = prepared['heads'], prepared['CP'], prepared['HDP']
    hw3 = 3 * heads * hdp
    # TODO(synk): generalize to N % 8 != 0 by padding rows (and masking nothing,
    # since softmax is per-row) -- not needed for this workload.
    assert N % 8 == 0, "row block must be a multiple of 8 sublanes"

    # Zero-pad the lane (channel) dim once, outside the kernel.
    x2d = jnp.pad(x.reshape(B * N, C), ((0, 0), (0, cp - C)))

    kernel = functools.partial(_attn_kernel, heads=heads, hdp=hdp)

    out2d = pl.pallas_call(
        kernel,
        out_shape=jax.ShapeDtypeStruct((B * N, cp), jnp.float32),
        grid=(B,),
        in_specs=[
            pl.BlockSpec((N, cp), lambda b: (b, 0)),           # x rows per batch
            pl.BlockSpec((cp, hw3), lambda b: (0, 0)),         # fused qkv weight
            pl.BlockSpec((1, hw3), lambda b: (0, 0)),          # fused qkv bias
            pl.BlockSpec((heads * hdp, cp), lambda b: (0, 0)),  # out_proj weight
            pl.BlockSpec((1, cp), lambda b: (0, 0)),           # out_proj bias
        ],
        out_specs=pl.BlockSpec((N, cp), lambda b: (b, 0)),
        compiler_params=pltpu.CompilerParams(
            dimension_semantics=("parallel",)),                # shards over 2 TCs on v7x
    )(x2d, prepared['w_qkv'], prepared['b_qkv'], prepared['wo'], prepared['bo'])

    return out2d[:, :C].reshape(B, N, C)


def init_params(key, dim):
    """Deterministic xavier-uniform weights, zero biases (mirrors reset_parameters)."""
    ks = jax.random.split(key, 4)
    limit = (6.0 / (dim + dim)) ** 0.5

    def xavier(k):
        return jax.random.uniform(k, (dim, dim), jnp.float32, -limit, limit)

    return {
        'wq': xavier(ks[0]), 'bq': jnp.zeros((dim,), jnp.float32),
        'wk': xavier(ks[1]), 'bk': jnp.zeros((dim,), jnp.float32),
        'wv': xavier(ks[2]), 'bv': jnp.zeros((dim,), jnp.float32),
        'wo': xavier(ks[3]), 'bo': jnp.zeros((dim,), jnp.float32),
    }


def reference(x, params, heads=1):
    """Pure-JAX reference mirroring the PyTorch forward (f32 linears)."""
    B, N, C = x.shape
    hd = C // heads
    scale = float(hd) ** (-0.5)
    xc = jnp.clip(x, -10000.0, 10000.0)
    q = (xc @ params['wq'].T + params['bq']).astype(jnp.float32)
    k = (xc @ params['wk'].T + params['bk']).astype(jnp.float32)
    v = (xc @ params['wv'].T + params['bv']).astype(jnp.float32)
    q = q.reshape(B, N, heads, hd).transpose(0, 2, 1, 3)
    k = k.reshape(B, N, heads, hd).transpose(0, 2, 1, 3)
    v = v.reshape(B, N, heads, hd).transpose(0, 2, 1, 3)
    attn = jax.nn.softmax(jnp.einsum('bhqd,bhkd->bhqk', q, k) * scale, axis=-1)
    out = jnp.einsum('bhqk,bhkd->bhqd', attn, v)
    out = out.transpose(0, 2, 1, 3).reshape(B, N, C)
    out = out.astype(jnp.bfloat16).astype(jnp.float32)
    return out @ params['wo'].T + params['bo']


if __name__ == "__main__":
    B, N, C, HEADS = 2, 8, 32, 1

    key = jax.random.PRNGKey(0)
    kx, kp = jax.random.split(key)
    x = jax.random.normal(kx, (B, N, C), dtype=jnp.float32)
    params = init_params(kp, C)

    prepared = prepare_params(params, heads=HEADS)   # hoisted: once per param set
    out = light_self_attention(x, prepared)
    out = jax.block_until_ready(out)

    ref = reference(x, params, heads=HEADS)
    assert out.shape == (B, N, C)
    # Tolerance 3e-2 accounts for the review-requested bf16 MXU feed of the
    # q/k/v and out projections (f32 accumulation); everything else matches
    # the f32 PyTorch math (scale folding and lane padding are exact).
    max_err = float(jnp.max(jnp.abs(out - ref)))
    assert jnp.allclose(out, ref, atol=3e-2, rtol=3e-2), f"max abs err {max_err}"

    print("KERNEL_OK")
</pallas_src>

<mosaic_0001>
module attributes {stable_mosaic.version = 11 : i64} {
  func.func @_attn_kernel(%arg0: i32, %arg1: memref<8x128xf32, #tpu.memory_space<vmem>>, %arg2: memref<128x384xbf16, #tpu.memory_space<vmem>>, %arg3: memref<1x384xf32, #tpu.memory_space<vmem>>, %arg4: memref<128x128xbf16, #tpu.memory_space<vmem>>, %arg5: memref<1x128xf32, #tpu.memory_space<vmem>>, %arg6: memref<8x128xf32, #tpu.memory_space<vmem>>) attributes {dimension_semantics = [#tpu.dimension_semantics<parallel>], iteration_bounds = array<i64: 2>, scalar_prefetch = 0 : i64, scratch_operands = 0 : i64, tpu.core_type = #tpu.core_type<tc>, window_params = [{transform_indices = @transform_0, window_bounds = array<i64: 8, 128>}, {pipeline_mode = #tpu.pipeline_mode<synchronous>, transform_indices = @transform_1, window_bounds = array<i64: 128, 384>}, {pipeline_mode = #tpu.pipeline_mode<synchronous>, transform_indices = @transform_2, window_bounds = array<i64: 1, 384>}, {pipeline_mode = #tpu.pipeline_mode<synchronous>, transform_indices = @transform_3, window_bounds = array<i64: 128, 128>}, {pipeline_mode = #tpu.pipeline_mode<synchronous>, transform_indices = @transform_4, window_bounds = array<i64: 1, 128>}, {transform_indices = @transform_5, window_bounds = array<i64: 8, 128>}]} {
    %c0 = arith.constant 0 : index
    %c0_0 = arith.constant 0 : index
    %0 = vector.load %arg1[%c0, %c0_0] : memref<8x128xf32, #tpu.memory_space<vmem>>, vector<8x128xf32>
    %cst = arith.constant -1.000000e+04 : f32
    %cst_1 = arith.constant 1.000000e+04 : f32
    %1 = vector.broadcast %cst : f32 to vector<8x128xf32>
    %2 = arith.maximumf %1, %0 : vector<8x128xf32>
    %3 = vector.broadcast %cst_1 : f32 to vector<8x128xf32>
    %4 = arith.minimumf %3, %2 : vector<8x128xf32>
    %5 = arith.truncf %4 : vector<8x128xf32> to vector<8x128xbf16>
    %c0_2 = arith.constant 0 : index
    %c0_3 = arith.constant 0 : index
    %6 = vector.load %arg2[%c0_2, %c0_3] : memref<128x384xbf16, #tpu.memory_space<vmem>>, vector<128x384xbf16>
    %cst_4 = arith.constant dense<0.000000e+00> : vector<8x384xf32>
    %7 = tpu.matmul %5, %6, %cst_4 {dimension_numbers = #tpu.dot_dimension_numbers<[1], [0], [0], [1], [0, 0, 1, 1], [], []>} : vector<8x128xbf16>, vector<128x384xbf16>, vector<8x384xf32> -> vector<8x384xf32>
    %c0_5 = arith.constant 0 : index
    %c0_6 = arith.constant 0 : index
    %8 = vector.load %arg3[%c0_5, %c0_6] : memref<1x384xf32, #tpu.memory_space<vmem>>, vector<1x384xf32>
    %9 = vector.broadcast %8 : vector<1x384xf32> to vector<8x384xf32>
    %10 = arith.addf %7, %9 : vector<8x384xf32>
    %11 = vector.extract_strided_slice %10 {offsets = [0, 0], sizes = [8, 128], strides = [1, 1]} : vector<8x384xf32> to vector<8x128xf32>
    %12 = vector.extract_strided_slice %10 {offsets = [0, 128], sizes = [8, 128], strides = [1, 1]} : vector<8x384xf32> to vector<8x128xf32>
    %13 = vector.extract_strided_slice %10 {offsets = [0, 256], sizes = [8, 128], strides = [1, 1]} : vector<8x384xf32> to vector<8x128xf32>
    "tpu.trace_start"() <{level = 10 : i32, message = "nd,md->nm"}> : () -> ()
    %cst_7 = arith.constant dense<0.000000e+00> : vector<8x8xf32>
    %14 = tpu.matmul %11, %12, %cst_7 {dimension_numbers = #tpu.dot_dimension_numbers<[1], [1], [0], [0], [0, 0, 1, 0], [], []>} : vector<8x128xf32>, vector<8x128xf32>, vector<8x8xf32> -> vector<8x8xf32>
    "tpu.trace_stop"() : () -> ()
    %cst_8 = arith.constant dense<0xFF800000> : vector<8xf32>
    %15 = vector.multi_reduction <maximumf>, %14, %cst_8 [1] : vector<8x8xf32> to vector<8xf32>
    %16 = vector.shape_cast %15 : vector<8xf32> to vector<8x1xf32>
    %17 = vector.broadcast %16 : vector<8x1xf32> to vector<8x8xf32>
    %18 = arith.subf %14, %17 : vector<8x8xf32>
    %19 = math.exp %18 : vector<8x8xf32>
    %cst_9 = arith.constant dense<0.000000e+00> : vector<8xf32>
    %20 = vector.multi_reduction <add>, %19, %cst_9 [1] : vector<8x8xf32> to vector<8xf32>
    %21 = vector.shape_cast %20 : vector<8xf32> to vector<8x1xf32>
    %22 = tpu.reciprocal %21 {approx = true} : vector<8x1xf32> -> vector<8x1xf32>
    %23 = vector.broadcast %22 : vector<8x1xf32> to vector<8x8xf32>
    %24 = arith.mulf %19, %23 : vector<8x8xf32>
    "tpu.trace_start"() <{level = 10 : i32, message = "nm,md->nd"}> : () -> ()
    %cst_10 = arith.constant dense<0.000000e+00> : vector<8x128xf32>
    %25 = tpu.matmul %24, %13, %cst_10 {dimension_numbers = #tpu.dot_dimension_numbers<[1], [0], [0], [1], [0, 0, 1, 1], [], []>} : vector<8x8xf32>, vector<8x128xf32>, vector<8x128xf32> -> vector<8x128xf32>
    "tpu.trace_stop"() : () -> ()
    %26 = arith.truncf %25 : vector<8x128xf32> to vector<8x128xbf16>
    %c0_11 = arith.constant 0 : index
    %c0_12 = arith.constant 0 : index
    %27 = vector.load %arg4[%c0_11, %c0_12] : memref<128x128xbf16, #tpu.memory_space<vmem>>, vector<128x128xbf16>
    %cst_13 = arith.constant dense<0.000000e+00> : vector<8x128xf32>
    %28 = tpu.matmul %26, %27, %cst_13 {dimension_numbers = #tpu.dot_dimension_numbers<[1], [0], [0], [1], [0, 0, 1, 1], [], []>} : vector<8x128xbf16>, vector<128x128xbf16>, vector<8x128xf32> -> vector<8x128xf32>
    %c0_14 = arith.constant 0 : index
    %c0_15 = arith.constant 0 : index
    %29 = vector.load %arg5[%c0_14, %c0_15] : memref<1x128xf32, #tpu.memory_space<vmem>>, vector<1x128xf32>
    %30 = vector.broadcast %29 : vector<1x128xf32> to vector<8x128xf32>
    %31 = arith.addf %28, %30 : vector<8x128xf32>
    %c0_16 = arith.constant 0 : index
    %c0_17 = arith.constant 0 : index
    %32 = vector.load %arg6[%c0_16, %c0_17] : memref<8x128xf32, #tpu.memory_space<vmem>>, vector<8x128xf32>
    tpu.vector_store %arg6[%c0_16, %c0_17], %31 {strides = array<i32>} : memref<8x128xf32, #tpu.memory_space<vmem>>, vector<8x128xf32>,
    return
  }
  func.func @transform_0(%arg0: i32) -> (i32, i32) {
    %c0_i32 = arith.constant 0 : i32
    %c0_i32_0 = arith.constant 0 : i32
    return %arg0, %c0_i32 : i32, i32
  }
  func.func @transform_1(%arg0: i32) -> (i32, i32) {
    %c0_i32 = arith.constant 0 : i32
    %c0_i32_0 = arith.constant 0 : i32
    %c0_i32_1 = arith.constant 0 : i32
    return %c0_i32, %c0_i32_0 : i32, i32
  }
  func.func @transform_2(%arg0: i32) -> (i32, i32) {
    %c0_i32 = arith.constant 0 : i32
    %c0_i32_0 = arith.constant 0 : i32
    %c0_i32_1 = arith.constant 0 : i32
    return %c0_i32, %c0_i32_0 : i32, i32
  }
  func.func @transform_3(%arg0: i32) -> (i32, i32) {
    %c0_i32 = arith.constant 0 : i32
    %c0_i32_0 = arith.constant 0 : i32
    %c0_i32_1 = arith.constant 0 : i32
    return %c0_i32, %c0_i32_0 : i32, i32
  }
  func.func @transform_4(%arg0: i32) -> (i32, i32) {
    %c0_i32 = arith.constant 0 : i32
    %c0_i32_0 = arith.constant 0 : i32
    %c0_i32_1 = arith.constant 0 : i32
    return %c0_i32, %c0_i32_0 : i32, i32
  }
  func.func @transform_5(%arg0: i32) -> (i32, i32) {
    %c0_i32 = arith.constant 0 : i32
    %c0_i32_0 = arith.constant 0 : i32
    return %arg0, %c0_i32 : i32, i32
  }
}

</mosaic_0001>

<llo_original>
// kernel: tpu_custom_call.1
$region0: #{tpu_custom_call.1}
  #allocation0 [shape = 'u32[]', space=smem, size = 0x4, offset = 0x4, fixed_abs, tag = 'smem constant byte address 0x4 - core index']
  #allocation1 [shape = 'u32[144,128]{1,0:T(1,128)}', space=vmem, size = 0x12000, scoped, tag = 'internal scratch']
  %s0 = inlined_call_operand.hbm [shape: f32[16,128], index: 0, kind: input, shape index: {}]
  %s1 = inlined_call_operand.hbm [shape: bf16[128,384], index: 1, kind: input, shape index: {}]
  %s2 = inlined_call_operand.vmem [shape: f32[1,384], index: 2, kind: input, shape index: {}]
  %s3 = inlined_call_operand.hbm [shape: bf16[128,128], index: 3, kind: input, shape index: {}]
  %s4 = inlined_call_operand.vmem [shape: f32[1,128], index: 4, kind: input, shape index: {}]
  %s5 = inlined_call_operand.hbm [shape: f32[16,128], index: 5, kind: output, shape index: {}]
  %s6 = sld [smem:[#allocation0]]
  $region65: #{tpu_custom_call.1} parent=0
    _
  %s8 = ssub.s32 1, %s6
  %s9 = scalar_select 0, %s8, %s6
  $region1: #{tpu_custom_call.1} parent=0
    #allocation2 [shape = 'u8[8192]{0}', space=vmem, size = 0x2000, scoped, tag = 'input window, operand 0']
    #allocation3 [shape = 's32[2]{0}', space=sflag, size = 0x8, scoped, tag = 'scoped memory for tpu_custom_call.1']
    #allocation4 [shape = 's32[2]{0}', space=sflag, size = 0x8, scoped, tag = 'scoped memory for tpu_custom_call.1']
    #allocation5 [shape = 'u8[98304]{0}', space=vmem, size = 0x18000, scoped, tag = 'input window, operand 1, single buffered']
    #allocation6 [shape = 's32[1]{0}', space=sflag, size = 0x4, scoped, tag = 'scoped memory for tpu_custom_call.1']
    #allocation7 [shape = 'u8[32768]{0}', space=vmem, size = 0x8000, scoped, tag = 'input window, operand 3, single buffered']
    #allocation8 [shape = 'u8[8192]{0}', space=vmem, size = 0x2000, scoped, tag = 'output window, operand 0']
    %10 = vsyncpa [#allocation3], 0
    %s11 = scalar_lea.sflag [#allocation3], 1
    %12 = vsyncpa %s11, 0
    %13 = vsyncpa [#allocation6], 0
    %14 = vsyncpa [#allocation4], 0
    %s15 = scalar_lea.sflag [#allocation4], 1
    %16 = vsyncpa %s15, 0
    loop: start=0, step=1, limit=4
    $region2: #{tpu_custom_call.1} parent=1 // loop_pre_header
      _
    $region3: #{tpu_custom_call.1} parent=1 // loop_header
      %s18 = sphi 0, %s22
      %p19 = scmp.ge.s32.totalorder %s18, 4
      %s28 = sphi 0, %s30
      %s31 = sphi 0, %s28
      %s32 = sphi 0, %s31
      %s48 = sphi 0, %s32
      %s52 = sphi 0, %s52
      %s54 = sphi 0, %s52
      %s55 = sphi 0, %s54
      %s69 = sphi 0, %s55
      %s73 = sphi 0, %s73
      %s75 = sphi 0, %s73
      %s76 = sphi 0, %s75
      %s90 = sphi 0, %s76
      %s94 = sphi 0, %s94
      %s96 = sphi 0, %s94
      %s97 = sphi 0, %s96
      %s111 = sphi 0, %s97
      %s115 = sphi 0, %s115
      %s117 = sphi 0, %s115
      %s118 = sphi 0, %s117
      %s132 = sphi 0, %s118
      %s138 = sphi 0, %s140
      %s141 = sphi 0, %s138
      %s142 = sphi 0, %s141
      %s158 = sphi 0, %s142
    $region4: #{tpu_custom_call.1} parent=1 // loop_header_branch
      %21 = sbr.rel (%p19) target = $region8
    $region5: #{tpu_custom_call.1} parent=1 // loop_body
      %s23 = ssub.s32 %s18, 1
      %s24 = ssub.s32 %s18, 2
      %s25 = sadd.s32 %s18, 1
      %s26 = ssub.s32 %s18, %s25
      %p27 = scmp.eq.s32.totalorder %s26, 0
      %s29 = sadd.s32 %s28, 1
      %s30 = scalar_select %p27, %s28, %s29
      %p33 = pneg %p27
      %p34 = scmp.eq.s32.totalorder %s18, 1
      %p35 = por %p33, %p34
      %p36 = scmp.ne.s32.totalorder %s28, %s31
      %p37 = scmp.eq.s32.totalorder %s18, 0
      %p38 = por %p36, %p37
      %p39 = scmp.ne.s32.totalorder %s28, %s31
      %p40 = scmp.eq.s32.totalorder %s23, 1
      %p41 = por %p39, %p40
      %p42 = scmp.ne.s32.totalorder %s31, %s32
      %p43 = scmp.eq.s32.totalorder %s23, 0
      %p44 = por %p42, %p43
      %p45 = scmp.ne.s32.totalorder %s31, %s32
      %p46 = scmp.eq.s32.totalorder %s24, 1
      %p47 = por %p45, %p46
      %p49 = scmp.ne.s32.totalorder %s32, %s48
      %p50 = scmp.eq.s32.totalorder %s24, 0
      %p51 = por %p49, %p50
      %s53 = sadd.s32 %s52, 1
      %p56 = scmp.eq.s32.totalorder %s18, 1
      %p57 = scmp.ne.s32.totalorder %s52, %s54
      %p58 = scmp.eq.s32.totalorder %s18, 0
      %p59 = por %p57, %p58
      %p60 = scmp.ne.s32.totalorder %s52, %s54
      %p61 = scmp.eq.s32.totalorder %s23, 1
      %p62 = por %p60, %p61
      %p63 = scmp.ne.s32.totalorder %s54, %s55
      %p64 = scmp.eq.s32.totalorder %s23, 0
      %p65 = por %p63, %p64
      %p66 = scmp.ne.s32.totalorder %s54, %s55
      %p67 = scmp.eq.s32.totalorder %s24, 1
      %p68 = por %p66, %p67
      %p70 = scmp.ne.s32.totalorder %s55, %s69
      %p71 = scmp.eq.s32.totalorder %s24, 0
      %p72 = por %p70, %p71
      %s74 = sadd.s32 %s73, 1
      %p77 = scmp.eq.s32.totalorder %s18, 1
      %p78 = scmp.ne.s32.totalorder %s73, %s75
      %p79 = scmp.eq.s32.totalorder %s18, 0
      %p80 = por %p78, %p79
      %p81 = scmp.ne.s32.totalorder %s73, %s75
      %p82 = scmp.eq.s32.totalorder %s23, 1
      %p83 = por %p81, %p82
      %p84 = scmp.ne.s32.totalorder %s75, %s76
      %p85 = scmp.eq.s32.totalorder %s23, 0
      %p86 = por %p84, %p85
      %p87 = scmp.ne.s32.totalorder %s75, %s76
      %p88 = scmp.eq.s32.totalorder %s24, 1
      %p89 = por %p87, %p88
      %p91 = scmp.ne.s32.totalorder %s76, %s90
      %p92 = scmp.eq.s32.totalorder %s24, 0
      %p93 = por %p91, %p92
      %s95 = sadd.s32 %s94, 1
      %p98 = scmp.eq.s32.totalorder %s18, 1
      %p99 = scmp.ne.s32.totalorder %s94, %s96
      %p100 = scmp.eq.s32.totalorder %s18, 0
      %p101 = por %p99, %p100
      %p102 = scmp.ne.s32.totalorder %s94, %s96
      %p103 = scmp.eq.s32.totalorder %s23, 1
      %p104 = por %p102, %p103
      %p105 = scmp.ne.s32.totalorder %s96, %s97
      %p106 = scmp.eq.s32.totalorder %s23, 0
      %p107 = por %p105, %p106
      %p108 = scmp.ne.s32.totalorder %s96, %s97
      %p109 = scmp.eq.s32.totalorder %s24, 1
      %p110 = por %p108, %p109
      %p112 = scmp.ne.s32.totalorder %s97, %s111
      %p113 = scmp.eq.s32.totalorder %s24, 0
      %p114 = por %p112, %p113
      %s116 = sadd.s32 %s115, 1
      %p119 = scmp.eq.s32.totalorder %s18, 1
      %p120 = scmp.ne.s32.totalorder %s115, %s117
      %p121 = scmp.eq.s32.totalorder %s18, 0
      %p122 = por %p120, %p121
      %p123 = scmp.ne.s32.totalorder %s115, %s117
      %p124 = scmp.eq.s32.totalorder %s23, 1
      %p125 = por %p123, %p124
      %p126 = scmp.ne.s32.totalorder %s117, %s118
      %p127 = scmp.eq.s32.totalorder %s23, 0
      %p128 = por %p126, %p127
      %p129 = scmp.ne.s32.totalorder %s117, %s118
      %p130 = scmp.eq.s32.totalorder %s24, 1
      %p131 = por %p129, %p130
      %p133 = scmp.ne.s32.totalorder %s118, %s132
      %p134 = scmp.eq.s32.totalorder %s24, 0
      %p135 = por %p133, %p134
      %s136 = ssub.s32 %s18, %s25
      %p137 = scmp.eq.s32.totalorder %s136, 0
      %s139 = sadd.s32 %s138, 1
      %s140 = scalar_select %p137, %s138, %s139
      %p143 = pneg %p137
      %p144 = scmp.eq.s32.totalorder %s18, 1
      %p145 = por %p143, %p144
      %p146 = scmp.ne.s32.totalorder %s138, %s141
      %p147 = scmp.eq.s32.totalorder %s18, 0
      %p148 = por %p146, %p147
      %p149 = scmp.ne.s32.totalorder %s138, %s141
      %p150 = scmp.eq.s32.totalorder %s23, 1
      %p151 = por %p149, %p150
      %p152 = scmp.ne.s32.totalorder %s141, %s142
      %p153 = scmp.eq.s32.totalorder %s23, 0
      %p154 = por %p152, %p153
      %p155 = scmp.ne.s32.totalorder %s141, %s142
      %p156 = scmp.eq.s32.totalorder %s24, 1
      %p157 = por %p155, %p156
      %p159 = scmp.ne.s32.totalorder %s142, %s158
      %p160 = scmp.eq.s32.totalorder %s24, 0
      %p161 = por %p159, %p160
      %p162 = scmp.le.s32.totalorder 1, %s18
      %p163 = scmp.lt.s32.totalorder %s18, 3
      %p164 = pnand %p162, %p163
      %p165 = pneg %p164
      // Predicated region
      $region9: #{tpu_custom_call.1} parent=5 // pred_check
        _
      $region10: #{tpu_custom_call.1} parent=5 // pred_check_branch
        %167 = sbr.rel (%p164) target = $region12
      $region11: #{tpu_custom_call.1} parent=5 // pred_region
        %s168 = ssub.s32 %s18, 1
        // Predicated region
        $region13: #{tpu_custom_call.1} parent=11 // pred_check
          %p169 = pneg %p65
        $region14: #{tpu_custom_call.1} parent=11 // pred_check_branch
          %171 = sbr.rel (%p169) target = $region16
        $region15: #{tpu_custom_call.1} parent=11 // pred_region
          %s173 = ssub.s32 3072, 3072
          %174 = vsyncadd [#allocation6], %s173
          %s175 = sshll.u32 [#allocation5], 4
          %s176 = int_to_ptr.vmem [resolvable:$true] %s175
          %181 = dma.hbm_to_vmem [thread:$0]  %s1, 3072, %s176, [#allocation6], 192, 192, 12
        $region16: #{tpu_custom_call.1} parent=11 // pred_fallthru
          _
        // Predicated region
        $region17: #{tpu_custom_call.1} parent=11 // pred_check
          %p182 = pneg %p86
        $region18: #{tpu_custom_call.1} parent=11 // pred_check_branch
          %184 = sbr.rel (%p182) target = $region20
        $region19: #{tpu_custom_call.1} parent=11 // pred_region
          _
        $region20: #{tpu_custom_call.1} parent=11 // pred_fallthru
          _
        // Predicated region
        $region21: #{tpu_custom_call.1} parent=11 // pred_check
          %p185 = pneg %p107
        $region22: #{tpu_custom_call.1} parent=11 // pred_check_branch
          %187 = sbr.rel (%p185) target = $region24
        $region23: #{tpu_custom_call.1} parent=11 // pred_region
          %s189 = ssub.s32 1024, 1024
          %190 = vsyncadd [#allocation6], %s189
          %s191 = sshll.u32 [#allocation7], 4
          %s192 = int_to_ptr.vmem [resolvable:$true] %s191
          %197 = dma.hbm_to_vmem [thread:$0]  %s3, 1024, %s192, [#allocation6], 64, 64, 4
        $region24: #{tpu_custom_call.1} parent=11 // pred_fallthru
          _
        // Predicated region
        $region25: #{tpu_custom_call.1} parent=11 // pred_check
          %p198 = pneg %p128
        $region26: #{tpu_custom_call.1} parent=11 // pred_check_branch
          %200 = sbr.rel (%p198) target = $region28
        $region27: #{tpu_custom_call.1} parent=11 // pred_region
          _
        $region28: #{tpu_custom_call.1} parent=11 // pred_fallthru
          _
      $region12: #{tpu_custom_call.1} parent=5 // pred_fallthru
        _
      %p201 = scmp.lt.s32.totalorder %s18, 2
      // Predicated region
      $region29: #{tpu_custom_call.1} parent=5 // pred_check
        %p202 = pneg %p201
      $region30: #{tpu_custom_call.1} parent=5 // pred_check_branch
        %204 = sbr.rel (%p202) target = $region32
      $region31: #{tpu_custom_call.1} parent=5 // pred_region
        // Predicated region
        $region33: #{tpu_custom_call.1} parent=31 // pred_check
          %p205 = pneg %p38
        $region34: #{tpu_custom_call.1} parent=31 // pred_check_branch
          %207 = sbr.rel (%p205) target = $region36
        $region35: #{tpu_custom_call.1} parent=31 // pred_region
          %s208 = sand.u32 %s28, 1
          %s209 = scalar_lea.sflag [#allocation3], %s208
          %s210 = sand.u32 %s28, 1
          %s211 = smul.addr %s210, 8
          %s212 = scalar_lea.vmem [#allocation2], %s211
          %s214 = ssub.s32 128, 128
          %215 = vsyncadd %s209, %s214
          %s216 = smul.addr %s18, 128
          %s217 = scalar_lea.hbm %s0, %s216
          %s219 = sshll.u32 %s212, 4
          %s220 = int_to_ptr.vmem [resolvable:$true] %s219
          %222 = dma.hbm_to_vmem [thread:$0]  %s217, 128, %s220, %s209
        $region36: #{tpu_custom_call.1} parent=31 // pred_fallthru
          _
      $region32: #{tpu_custom_call.1} parent=5 // pred_fallthru
        _
      %p223 = scmp.le.s32.totalorder 1, %s18
      %p224 = scmp.lt.s32.totalorder %s18, 3
      %p225 = pnand %p223, %p224
      %p226 = pneg %p225
      // Predicated region
      $region37: #{tpu_custom_call.1} parent=5 // pred_check
        _
      $region38: #{tpu_custom_call.1} parent=5 // pred_check_branch
        %228 = sbr.rel (%p225) target = $region40
      $region39: #{tpu_custom_call.1} parent=5 // pred_region
        %s229 = ssub.s32 %s18, 1
        %s230 = sand.u32 %s31, 1
        %s231 = scalar_lea.sflag [#allocation3], %s230
        %s232 = sand.u32 %s31, 1
        %s233 = smul.addr %s232, 8
        %s234 = scalar_lea.vmem [#allocation2], %s233
        // Predicated region
        $region41: #{tpu_custom_call.1} parent=39 // pred_check
          %p235 = pneg %p44
        $region42: #{tpu_custom_call.1} parent=39 // pred_check_branch
          %237 = sbr.rel (%p235) target = $region44
        $region43: #{tpu_custom_call.1} parent=39 // pred_region
          %238 = dma.done %s231, 128
        $region44: #{tpu_custom_call.1} parent=39 // pred_fallthru
          _
        // Predicated region
        $region45: #{tpu_custom_call.1} parent=39 // pred_check
          %p239 = pneg %p65
        $region46: #{tpu_custom_call.1} parent=39 // pred_check_branch
          %241 = sbr.rel (%p239) target = $region48
        $region47: #{tpu_custom_call.1} parent=39 // pred_region
          %242 = dma.done [#allocation6], 3072
        $region48: #{tpu_custom_call.1} parent=39 // pred_fallthru
          _
        // Predicated region
        $region49: #{tpu_custom_call.1} parent=39 // pred_check
          %p243 = pneg %p107
        $region50: #{tpu_custom_call.1} parent=39 // pred_check_branch
          %245 = sbr.rel (%p243) target = $region52
        $region51: #{tpu_custom_call.1} parent=39 // pred_region
          %246 = dma.done [#allocation6], 1024
        $region52: #{tpu_custom_call.1} parent=39 // pred_fallthru
          _
        %s247 = sand.u32 %s31, 1
        %s248 = scalar_lea.sflag [#allocation3], %s247
        %s249 = sand.u32 %s31, 1
        %s250 = smul.addr %s249, 8
        %s251 = scalar_lea.vmem [#allocation2], %s250
        %p252 = pneg %p44
        %p253 = pneg %p41
        %p254 = pneg %p65
        %p255 = pneg %p62
        %p256 = pneg %p86
        %p257 = pneg %p83
        %p258 = pneg %p107
        %p259 = pneg %p104
        %p260 = pneg %p128
        %p261 = pneg %p125
        %p262 = pneg %p154
        %p263 = pneg %p151
        %s264 = sand.u32 %s141, 1
        %s265 = scalar_lea.sflag [#allocation4], %s264
        %s266 = sand.u32 %s141, 1
        %s267 = smul.addr %s266, 8
        %s268 = scalar_lea.vmem [#allocation8], %s267
        %v270 = vld [vmem:[%s234] sm:$0xff]
        %v271 = vmax.f32 %v270, -10000.0
        %v272 = vmin.f32 %v271, 10000.0
        %v273 = vpack.c.bf16 %v272, %v272
        %v274 = vld [vmem:[#allocation5] sm:$0xff]
        %v275 = vld [vmem:[#allocation5 + $0x8] sm:$0xf]
        %v276 = vld [vmem:[#allocation5 + $0xc] sm:$0xff]
        %v277 = vld [vmem:[#allocation5 + $0x14] sm:$0xf]
        %v278 = vld [vmem:[#allocation5 + $0x18] sm:$0xff]
        %v279 = vld [vmem:[#allocation5 + $0x20] sm:$0xf]
        %v280 = vld [vmem:[#allocation5 + $0x24] sm:$0xff]
        %v281 = vld [vmem:[#allocation5 + $0x2c] sm:$0xf]
        %v282 = vld [vmem:[#allocation5 + $0x30] sm:$0xff]
        %v283 = vld [vmem:[#allocation5 + $0x38] sm:$0xf]
        %v284 = vld [vmem:[#allocation5 + $0x3c] sm:$0xff]
        %v285 = vld [vmem:[#allocation5 + $0x44] sm:$0xf]
        %v286 = vld [vmem:[#allocation5 + $0x48] sm:$0xff]
        %v287 = vld [vmem:[#allocation5 + $0x50] sm:$0xf]
        %v288 = vld [vmem:[#allocation5 + $0x54] sm:$0xff]
        %v289 = vld [vmem:[#allocation5 + $0x5c] sm:$0xf]
        %v290 = vld [vmem:[#allocation5 + $0x60] sm:$0xff]
        %v291 = vld [vmem:[#allocation5 + $0x68] sm:$0xf]
        %v292 = vld [vmem:[#allocation5 + $0x6c] sm:$0xff]
        %v293 = vld [vmem:[#allocation5 + $0x74] sm:$0xf]
        %v294 = vld [vmem:[#allocation5 + $0x78] sm:$0xff]
        %v295 = vld [vmem:[#allocation5 + $0x80] sm:$0xf]
        %v296 = vld [vmem:[#allocation5 + $0x84] sm:$0xff]
        %v297 = vld [vmem:[#allocation5 + $0x8c] sm:$0xf]
        %v298 = vld [vmem:[#allocation5 + $0x90] sm:$0xff]
        %v299 = vld [vmem:[#allocation5 + $0x98] sm:$0xf]
        %v300 = vld [vmem:[#allocation5 + $0x9c] sm:$0xff]
        %v301 = vld [vmem:[#allocation5 + $0xa4] sm:$0xf]
        %v302 = vld [vmem:[#allocation5 + $0xa8] sm:$0xff]
        %v303 = vld [vmem:[#allocation5 + $0xb0] sm:$0xf]
        %v304 = vld [vmem:[#allocation5 + $0xb4] sm:$0xff]
        %v305 = vld [vmem:[#allocation5 + $0xbc] sm:$0xf]
        %v306 = vld [vmem:[%s2] sm:$0x7]
        %v308 = vlaneseq
        %v309 = vshrl.u32 %v308, 7
        %v310 = vsub.s32 0, %v309
        %v311 = vrot.slane %v306, %v310
        %v312 = vlaneseq
        %v313 = vshrl.u32 %v312, 7
        %v314 = vsub.s32 1, %v313
        %v315 = vrot.slane %v306, %v314
        %v316 = vlaneseq
        %v317 = vshrl.u32 %v316, 7
        %v318 = vsub.s32 2, %v317
        %v319 = vrot.slane %v306, %v318
        %v355 = vunpack.c.l.b16 %v274
        %v356 = vunpack.c.h.b16 %v274
        %v357 = vunpack.c.l.b16 %v275
        %v358 = vunpack.c.l.b16 %v276
        %v359 = vunpack.c.h.b16 %v276
        %v360 = vunpack.c.l.b16 %v277
        %v361 = vunpack.c.l.b16 %v278
        %v362 = vunpack.c.h.b16 %v278
        %v363 = vunpack.c.l.b16 %v279
        %v364 = vunpack.c.l.b16 %v280
        %v365 = vunpack.c.h.b16 %v280
        %v366 = vunpack.c.l.b16 %v281
        %v367 = vunpack.c.l.b16 %v282
        %v368 = vunpack.c.h.b16 %v282
        %v369 = vunpack.c.l.b16 %v283
        %v370 = vunpack.c.l.b16 %v284
        %v371 = vunpack.c.h.b16 %v284
        %v372 = vunpack.c.l.b16 %v285
        %v373 = vunpack.c.l.b16 %v286
        %v374 = vunpack.c.h.b16 %v286
        %v375 = vunpack.c.l.b16 %v287
        %v376 = vunpack.c.l.b16 %v288
        %v377 = vunpack.c.h.b16 %v288
        %v378 = vunpack.c.l.b16 %v289
        %v379 = vunpack.c.l.b16 %v290
        %v380 = vunpack.c.h.b16 %v290
        %v381 = vunpack.c.l.b16 %v291
        %v382 = vunpack.c.l.b16 %v292
        %v383 = vunpack.c.h.b16 %v292
        %v384 = vunpack.c.l.b16 %v293
        %v385 = vunpack.c.l.b16 %v294
        %v386 = vunpack.c.h.b16 %v294
        %v387 = vunpack.c.l.b16 %v295
        %v388 = vunpack.c.l.b16 %v296
        %v389 = vunpack.c.h.b16 %v296
        %v390 = vunpack.c.l.b16 %v297
        %v391 = vunpack.c.l.b16 %v298
        %v392 = vunpack.c.h.b16 %v298
        %v393 = vunpack.c.l.b16 %v299
        %v394 = vunpack.c.l.b16 %v300
        %v395 = vunpack.c.h.b16 %v300
        %v396 = vunpack.c.l.b16 %v301
        %v397 = vunpack.c.l.b16 %v302
        %v398 = vunpack.c.h.b16 %v302
        %v399 = vunpack.c.l.b16 %v303
        %v400 = vunpack.c.l.b16 %v304
        %v401 = vunpack.c.h.b16 %v304
        %v402 = vunpack.c.l.b16 %v305
        %v403 = vpack.c.b16 %v358, %v355
        %v404 = vpack.c.b16 %v359, %v356
        %v405 = vpack.c.b16 %v360, %v357
        %v406 = vpack.c.b16 %v364, %v361
        %v407 = vpack.c.b16 %v365, %v362
        %v408 = vpack.c.b16 %v366, %v363
        %v409 = vpack.c.b16 %v370, %v367
        %v410 = vpack.c.b16 %v371, %v368
        %v411 = vpack.c.b16 %v372, %v369
        %v412 = vpack.c.b16 %v376, %v373
        %v413 = vpack.c.b16 %v377, %v374
        %v414 = vpack.c.b16 %v378, %v375
        %v415 = vpack.c.b16 %v382, %v379
        %v416 = vpack.c.b16 %v383, %v380
        %v417 = vpack.c.b16 %v384, %v381
        %v418 = vpack.c.b16 %v388, %v385
        %v419 = vpack.c.b16 %v389, %v386
        %v420 = vpack.c.b16 %v390, %v387
        %v421 = vpack.c.b16 %v394, %v391
        %v422 = vpack.c.b16 %v395, %v392
        %v423 = vpack.c.b16 %v396, %v393
        %v424 = vpack.c.b16 %v400, %v397
        %v425 = vpack.c.b16 %v401, %v398
        %v426 = vpack.c.b16 %v402, %v399
        %451 = vmatprep.subr.bf16.mxu0 %v404
        %452 = vmatpush1.bf16.msra.mxu0 %v403
        %453 = vmatprep.subr.bf16.mxu0 %v407
        %454 = vmatpush1.bf16.msra.mxu0 %v406
        %455 = vmatprep.subr.bf16.mxu0 %v410
        %456 = vmatpush1.bf16.msra.mxu0 %v409
        %457 = vmatprep.subr.bf16.mxu0 %v413
        %458 = vmatpush1.bf16.msra.mxu0 %v412
        %459 = vmatprep.subr.bf16.mxu0 %v416
        %460 = vmatpush1.bf16.msra.mxu0 %v415
        %461 = vmatprep.subr.bf16.mxu0 %v419
        %462 = vmatpush1.bf16.msra.mxu0 %v418
        %463 = vmatprep.subr.bf16.mxu0 %v422
        %464 = vmatpush1.bf16.msra.mxu0 %v421
        %465 = vmatprep.subr.bf16.mxu0 %v425
        %466 = vmatpush1.bf16.msra.mxu0 %v424
        %467 = vmatprep.subr.bf16.mxu0 0
        %468 = vmatpush1.bf16.msra.mxu0 0
        %469 = vmatprep.subr.bf16.mxu0 0
        %470 = vmatpush1.bf16.msra.mxu0 0
        %471 = vmatprep.subr.bf16.mxu0 0
        %472 = vmatpush1.bf16.msra.mxu0 0
        %473 = vmatprep.subr.bf16.mxu0 0
        %474 = vmatpush1.bf16.msra.mxu0 0
        %475 = vmatprep.subr.bf16.mxu0 0
        %476 = vmatpush1.bf16.msra.mxu0 0
        %477 = vmatprep.subr.bf16.mxu0 0
        %478 = vmatpush1.bf16.msra.mxu0 0
        %479 = vmatprep.subr.bf16.mxu0 0
        %480 = vmatpush1.bf16.msra.mxu0 0
        %481 = vmatprep.subr.bf16.mxu0 0
        %482 = vmatpush1.bf16.msra.mxu0 0
        %483 = vmatprep.mubr.bf16.mxu0 0
        %484 = vmatmul.mubr.bf16.gmra.mrb[0].mxu0 %v273
        %v485 = vpop.f32.mrb[0].mxu0
        %v486 = vadd.f32 %v311, %v485
        %v487 = vpop.f32.mrb[0].mxu0
        %v488 = vadd.f32 %v315, %v487
        %v489 = vpop.f32.mrb[0].mxu0
        %v490 = vpop.f32.mrb[0].mxu0
        %491 = vdwg.mxu0
        %492 = vmatprep.subr.bf16.mxu0 0
        %493 = vmatpush1.bf16.msra.mxu0 %v405
        %494 = vmatprep.subr.bf16.mxu0 0
        %495 = vmatpush1.bf16.msra.mxu0 %v408
        %496 = vmatprep.subr.bf16.mxu0 0
        %497 = vmatpush1.bf16.msra.mxu0 %v411
        %498 = vmatprep.subr.bf16.mxu0 0
        %499 = vmatpush1.bf16.msra.mxu0 %v414
        %500 = vmatprep.subr.bf16.mxu0 0
        %501 = vmatpush1.bf16.msra.mxu0 %v417
        %502 = vmatprep.subr.bf16.mxu0 0
        %503 = vmatpush1.bf16.msra.mxu0 %v420
        %504 = vmatprep.subr.bf16.mxu0 0
        %505 = vmatpush1.bf16.msra.mxu0 %v423
        %506 = vmatprep.subr.bf16.mxu0 0
        %507 = vmatpush1.bf16.msra.mxu0 %v426
        %508 = vmatprep.subr.bf16.mxu0 0
        %509 = vmatpush1.bf16.msra.mxu0 0
        %510 = vmatprep.subr.bf16.mxu0 0
        %511 = vmatpush1.bf16.msra.mxu0 0
        %512 = vmatprep.subr.bf16.mxu0 0
        %513 = vmatpush1.bf16.msra.mxu0 0
        %514 = vmatprep.subr.bf16.mxu0 0
        %515 = vmatpush1.bf16.msra.mxu0 0
        %516 = vmatprep.subr.bf16.mxu0 0
        %517 = vmatpush1.bf16.msra.mxu0 0
        %518 = vmatprep.subr.bf16.mxu0 0
        %519 = vmatpush1.bf16.msra.mxu0 0
        %520 = vmatprep.subr.bf16.mxu0 0
        %521 = vmatpush1.bf16.msra.mxu0 0
        %522 = vmatprep.subr.bf16.mxu0 0
        %523 = vmatpush1.bf16.msra.mxu0 0
        %524 = vmatprep.mubr.bf16.mxu0 0
        %525 = vmatmul.mubr.bf16.gmra.mrb[0].mxu0 %v273
        %v526 = vpop.f32.mrb[0].mxu0
        %v527 = vadd.f32 %v319, %v526
        %v528 = vpop.f32.mrb[0].mxu0
        %v529 = vpop.f32.mrb[0].mxu0
        %v530 = vpop.f32.mrb[0].mxu0
        %531 = vdwg.mxu0
        %532 = vmatprep.subr.mxu0 0.0
        %533 = vmatpush1.xpose.msra.mxu0 %v488
        %534 = vmatprep.subr.mxu0 0.0
        %535 = vmatpush1.xpose.msra.mxu0 0.0
        %536 = vmatprep.subr.mxu0 0.0
        %537 = vmatpush1.xpose.msra.mxu0 0.0
        %538 = vmatprep.subr.mxu0 0.0
        %539 = vmatpush1.xpose.msra.mxu0 0.0
        %540 = vmatprep.subr.mxu0 0.0
        %541 = vmatpush1.xpose.msra.mxu0 0.0
        %542 = vmatprep.subr.mxu0 0.0
        %543 = vmatpush1.xpose.msra.mxu0 0.0
        %544 = vmatprep.subr.mxu0 0.0
        %545 = vmatpush1.xpose.msra.mxu0 0.0
        %546 = vmatprep.subr.mxu0 0.0
        %547 = vmatpush1.xpose.msra.mxu0 0.0
        %548 = vmatprep.subr.mxu0 0.0
        %549 = vmatpush1.xpose.msra.mxu0 0.0
        %550 = vmatprep.subr.mxu0 0.0
        %551 = vmatpush1.xpose.msra.mxu0 0.0
        %552 = vmatprep.subr.mxu0 0.0
        %553 = vmatpush1.xpose.msra.mxu0 0.0
        %554 = vmatprep.subr.mxu0 0.0
        %555 = vmatpush1.xpose.msra.mxu0 0.0
        %556 = vmatprep.subr.mxu0 0.0
        %557 = vmatpush1.xpose.msra.mxu0 0.0
        %558 = vmatprep.subr.mxu0 0.0
        %559 = vmatpush1.xpose.msra.mxu0 0.0
        %560 = vmatprep.subr.mxu0 0.0
        %561 = vmatpush1.xpose.msra.mxu0 0.0
        %562 = vmatprep.subr.mxu0 0.0
        %563 = vmatpush1.xpose.msra.mxu0 0.0
        %564 = vmatprep.subr.mxu0 0.0
        %565 = vmatpush1.xpose.msra.mxu0 0.0
        %566 = vmatprep.subr.mxu0 0.0
        %567 = vmatpush1.xpose.msra.mxu0 0.0
        %568 = vmatprep.subr.mxu0 0.0
        %569 = vmatpush1.xpose.msra.mxu0 0.0
        %570 = vmatprep.subr.mxu0 0.0
        %571 = vmatpush1.xpose.msra.mxu0 0.0
        %572 = vmatprep.subr.mxu0 0.0
        %573 = vmatpush1.xpose.msra.mxu0 0.0
        %574 = vmatprep.subr.mxu0 0.0
        %575 = vmatpush1.xpose.msra.mxu0 0.0
        %576 = vmatprep.subr.mxu0 0.0
        %577 = vmatpush1.xpose.msra.mxu0 0.0
        %578 = vmatprep.subr.mxu0 0.0
        %579 = vmatpush1.xpose.msra.mxu0 0.0
        %580 = vmatprep.subr.mxu0 0.0
        %581 = vmatpush1.xpose.msra.mxu0 0.0
        %582 = vmatprep.subr.mxu0 0.0
        %583 = vmatpush1.xpose.msra.mxu0 0.0
        %584 = vmatprep.subr.mxu0 0.0
        %585 = vmatpush1.xpose.msra.mxu0 0.0
        %586 = vmatprep.subr.mxu0 0.0
        %587 = vmatpush1.xpose.msra.mxu0 0.0
        %588 = vmatprep.subr.mxu0 0.0
        %589 = vmatpush1.xpose.msra.mxu0 0.0
        %590 = vmatprep.subr.mxu0 0.0
        %591 = vmatpush1.xpose.msra.mxu0 0.0
        %592 = vmatprep.subr.mxu0 0.0
        %593 = vmatpush1.xpose.msra.mxu0 0.0
        %594 = vmatprep.subr.mxu0 0.0
        %595 = vmatpush1.xpose.msra.mxu0 0.0
        %596 = vmatprep.mubr.f32.mxu0 0.0
        %597 = vmatmul.mubr.f32.gmra.mrb[0].mxu0 %v486
        %v598 = vpop.f32.mrb[0].mxu0
        %v599 = vadd.f32 0.0, %v598
        %v600 = vpop.f32.mrb[0].mxu0
        %601 = vdwg.mxu0
        %vm602 = vcmask 64512
        %v603 = vsel %vm602, %v599, -inf
        %604 = vmax.xlane.f32.xlu0 %v603
        %v605 = vpop.xlane.xlu0 %604
        %v606 = vsub.f32 %v599, %v605
        %v607 = vmul.f32 %v606, 1.442695
        %v608 = vpow.pop %v607
        %v609 = vsel %vm602, %v608, 0.0
        %610 = vadd.xlane.f32.xlu0 %v609
        %v611 = vpop.xlane.xlu0 %610
        %v612 = vrcp.pop %v611
        %v613 = vmul.f32 %v608, %v612
        %v615 = vsel %vm602, %v613, 0
        %617 = vmatprep.subr.mxu0 0.0
        %618 = vmatpush1.msra.mxu0 %v527
        %619 = vmatprep.subr.mxu0 0.0
        %620 = vmatpush1.msra.mxu0 0.0
        %621 = vmatprep.subr.mxu0 0.0
        %622 = vmatpush1.msra.mxu0 0.0
        %623 = vmatprep.subr.mxu0 0.0
        %624 = vmatpush1.msra.mxu0 0.0
        %625 = vmatprep.subr.mxu0 0.0
        %626 = vmatpush1.msra.mxu0 0.0
        %627 = vmatprep.subr.mxu0 0.0
        %628 = vmatpush1.msra.mxu0 0.0
        %629 = vmatprep.subr.mxu0 0.0
        %630 = vmatpush1.msra.mxu0 0.0
        %631 = vmatprep.subr.mxu0 0.0
        %632 = vmatpush1.msra.mxu0 0.0
        %633 = vmatprep.subr.mxu0 0.0
        %634 = vmatpush1.msra.mxu0 0.0
        %635 = vmatprep.subr.mxu0 0.0
        %636 = vmatpush1.msra.mxu0 0.0
        %637 = vmatprep.subr.mxu0 0.0
        %638 = vmatpush1.msra.mxu0 0.0
        %639 = vmatprep.subr.mxu0 0.0
        %640 = vmatpush1.msra.mxu0 0.0
        %641 = vmatprep.subr.mxu0 0.0
        %642 = vmatpush1.msra.mxu0 0.0
        %643 = vmatprep.subr.mxu0 0.0
        %644 = vmatpush1.msra.mxu0 0.0
        %645 = vmatprep.subr.mxu0 0.0
        %646 = vmatpush1.msra.mxu0 0.0
        %647 = vmatprep.subr.mxu0 0.0
        %648 = vmatpush1.msra.mxu0 0.0
        %649 = vmatprep.subr.mxu0 0.0
        %650 = vmatpush1.msra.mxu0 0.0
        %651 = vmatprep.subr.mxu0 0.0
        %652 = vmatpush1.msra.mxu0 0.0
        %653 = vmatprep.subr.mxu0 0.0
        %654 = vmatpush1.msra.mxu0 0.0
        %655 = vmatprep.subr.mxu0 0.0
        %656 = vmatpush1.msra.mxu0 0.0
        %657 = vmatprep.subr.mxu0 0.0
        %658 = vmatpush1.msra.mxu0 0.0
        %659 = vmatprep.subr.mxu0 0.0
        %660 = vmatpush1.msra.mxu0 0.0
        %661 = vmatprep.subr.mxu0 0.0
        %662 = vmatpush1.msra.mxu0 0.0
        %663 = vmatprep.subr.mxu0 0.0
        %664 = vmatpush1.msra.mxu0 0.0
        %665 = vmatprep.subr.mxu0 0.0
        %666 = vmatpush1.msra.mxu0 0.0
        %667 = vmatprep.subr.mxu0 0.0
        %668 = vmatpush1.msra.mxu0 0.0
        %669 = vmatprep.subr.mxu0 0.0
        %670 = vmatpush1.msra.mxu0 0.0
        %671 = vmatprep.subr.mxu0 0.0
        %672 = vmatpush1.msra.mxu0 0.0
        %673 = vmatprep.subr.mxu0 0.0
        %674 = vmatpush1.msra.mxu0 0.0
        %675 = vmatprep.subr.mxu0 0.0
        %676 = vmatpush1.msra.mxu0 0.0
        %677 = vmatprep.subr.mxu0 0.0
        %678 = vmatpush1.msra.mxu0 0.0
        %679 = vmatprep.subr.mxu0 0.0
        %680 = vmatpush1.msra.mxu0 0.0
        %681 = vmatprep.mubr.f32.mxu0 0.0
        %682 = vmatmul.mubr.f32.gmra.mrb[0].mxu0 %v615
        %v683 = vpop.f32.mrb[0].mxu0
        %v684 = vadd.f32 0.0, %v683
        %v685 = vpop.f32.mrb[0].mxu0
        %686 = vdwg.mxu0
        %v687 = vpack.c.bf16 %v684, %v684
        %v688 = vld [vmem:[#allocation7] sm:$0xf]
        %v689 = vld [vmem:[#allocation7 + $0x4] sm:$0xf]
        %v690 = vld [vmem:[#allocation7 + $0x8] sm:$0xf]
        %v691 = vld [vmem:[#allocation7 + $0xc] sm:$0xf]
        %v692 = vld [vmem:[#allocation7 + $0x10] sm:$0xf]
        %v693 = vld [vmem:[#allocation7 + $0x14] sm:$0xf]
        %v694 = vld [vmem:[#allocation7 + $0x18] sm:$0xf]
        %v695 = vld [vmem:[#allocation7 + $0x1c] sm:$0xf]
        %v696 = vld [vmem:[#allocation7 + $0x20] sm:$0xf]
        %v697 = vld [vmem:[#allocation7 + $0x24] sm:$0xf]
        %v698 = vld [vmem:[#allocation7 + $0x28] sm:$0xf]
        %v699 = vld [vmem:[#allocation7 + $0x2c] sm:$0xf]
        %v700 = vld [vmem:[#allocation7 + $0x30] sm:$0xf]
        %v701 = vld [vmem:[#allocation7 + $0x34] sm:$0xf]
        %v702 = vld [vmem:[#allocation7 + $0x38] sm:$0xf]
        %v703 = vld [vmem:[#allocation7 + $0x3c] sm:$0xf]
        %v704 = vld [vmem:[%s4] sm:$0x1]
        %v706 = vlaneseq
        %v707 = vshrl.u32 %v706, 7
        %v708 = vsub.s32 0, %v707
        %v709 = vrot.slane %v704, %v708
        %v727 = vunpack.c.l.b16 %v688
        %v728 = vunpack.c.l.b16 %v689
        %v729 = vunpack.c.l.b16 %v690
        %v730 = vunpack.c.l.b16 %v691
        %v731 = vunpack.c.l.b16 %v692
        %v732 = vunpack.c.l.b16 %v693
        %v733 = vunpack.c.l.b16 %v694
        %v734 = vunpack.c.l.b16 %v695
        %v735 = vunpack.c.l.b16 %v696
        %v736 = vunpack.c.l.b16 %v697
        %v737 = vunpack.c.l.b16 %v698
        %v738 = vunpack.c.l.b16 %v699
        %v739 = vunpack.c.l.b16 %v700
        %v740 = vunpack.c.l.b16 %v701
        %v741 = vunpack.c.l.b16 %v702
        %v742 = vunpack.c.l.b16 %v703
        %v743 = vpack.c.b16 %v728, %v727
        %v744 = vpack.c.b16 %v730, %v729
        %v745 = vpack.c.b16 %v732, %v731
        %v746 = vpack.c.b16 %v734, %v733
        %v747 = vpack.c.b16 %v736, %v735
        %v748 = vpack.c.b16 %v738, %v737
        %v749 = vpack.c.b16 %v740, %v739
        %v750 = vpack.c.b16 %v742, %v741
        %759 = vmatprep.subr.bf16.mxu0 0
        %760 = vmatpush1.bf16.msra.mxu0 %v743
        %761 = vmatprep.subr.bf16.mxu0 0
        %762 = vmatpush1.bf16.msra.mxu0 %v744
        %763 = vmatprep.subr.bf16.mxu0 0
        %764 = vmatpush1.bf16.msra.mxu0 %v745
        %765 = vmatprep.subr.bf16.mxu0 0
        %766 = vmatpush1.bf16.msra.mxu0 %v746
        %767 = vmatprep.subr.bf16.mxu0 0
        %768 = vmatpush1.bf16.msra.mxu0 %v747
        %769 = vmatprep.subr.bf16.mxu0 0
        %770 = vmatpush1.bf16.msra.mxu0 %v748
        %771 = vmatprep.subr.bf16.mxu0 0
        %772 = vmatpush1.bf16.msra.mxu0 %v749
        %773 = vmatprep.subr.bf16.mxu0 0
        %774 = vmatpush1.bf16.msra.mxu0 %v750
        %775 = vmatprep.subr.bf16.mxu0 0
        %776 = vmatpush1.bf16.msra.mxu0 0
        %777 = vmatprep.subr.bf16.mxu0 0
        %778 = vmatpush1.bf16.msra.mxu0 0
        %779 = vmatprep.subr.bf16.mxu0 0
        %780 = vmatpush1.bf16.msra.mxu0 0
        %781 = vmatprep.subr.bf16.mxu0 0
        %782 = vmatpush1.bf16.msra.mxu0 0
        %783 = vmatprep.subr.bf16.mxu0 0
        %784 = vmatpush1.bf16.msra.mxu0 0
        %785 = vmatprep.subr.bf16.mxu0 0
        %786 = vmatpush1.bf16.msra.mxu0 0
        %787 = vmatprep.subr.bf16.mxu0 0
        %788 = vmatpush1.bf16.msra.mxu0 0
        %789 = vmatprep.subr.bf16.mxu0 0
        %790 = vmatpush1.bf16.msra.mxu0 0
        %791 = vmatprep.mubr.bf16.mxu0 0
        %792 = vmatmul.mubr.bf16.gmra.mrb[0].mxu0 %v687
        %v793 = vpop.f32.mrb[0].mxu0
        %v794 = vadd.f32 %v709, %v793
        %v795 = vpop.f32.mrb[0].mxu0
        %v796 = vpop.f32.mrb[0].mxu0
        %v797 = vpop.f32.mrb[0].mxu0
        %798 = vdwg.mxu0
        %799 = vst [vmem:[%s268] sm:$0xff] %v794
        %s800 = sand.u32 %s141, 1
        %s801 = scalar_lea.sflag [#allocation4], %s800
        %s802 = sand.u32 %s141, 1
        %s803 = smul.addr %s802, 8
        %s804 = scalar_lea.vmem [#allocation8], %s803
        // Predicated region
        $region53: #{tpu_custom_call.1} parent=39 // pred_check
          %p805 = pneg %p151
        $region54: #{tpu_custom_call.1} parent=39 // pred_check_branch
          %807 = sbr.rel (%p805) target = $region56
        $region55: #{tpu_custom_call.1} parent=39 // pred_region
          %s809 = ssub.s32 128, 128
          %810 = vsyncadd %s801, %s809
          %s811 = smul.addr %s23, 128
          %s812 = scalar_lea.hbm %s5, %s811
          %s814 = sshll.u32 %s804, 4
          %s815 = int_to_ptr.vmem [resolvable:$true] %s814
          %817 = dma.vmem_to_hbm [thread:$0]  %s815, 128, %s812, %s801
        $region56: #{tpu_custom_call.1} parent=39 // pred_fallthru
          _
      $region40: #{tpu_custom_call.1} parent=5 // pred_fallthru
        _
      %p818 = scmp.le.s32.totalorder 2, %s18
      // Predicated region
      $region57: #{tpu_custom_call.1} parent=5 // pred_check
        %p819 = pneg %p818
      $region58: #{tpu_custom_call.1} parent=5 // pred_check_branch
        %821 = sbr.rel (%p819) target = $region60
      $region59: #{tpu_custom_call.1} parent=5 // pred_region
        %s822 = ssub.s32 %s18, 2
        // Predicated region
        $region61: #{tpu_custom_call.1} parent=59 // pred_check
          %p823 = pneg %p157
        $region62: #{tpu_custom_call.1} parent=59 // pred_check_branch
          %825 = sbr.rel (%p823) target = $region64
        $region63: #{tpu_custom_call.1} parent=59 // pred_region
          %s826 = sand.u32 %s142, 1
          %s827 = scalar_lea.sflag [#allocation4], %s826
          %s828 = sand.u32 %s142, 1
          %s829 = smul.addr %s828, 8
          %s830 = scalar_lea.vmem [#allocation8], %s829
          %831 = dma.done %s827, 128
        $region64: #{tpu_custom_call.1} parent=59 // pred_fallthru
          _
      $region60: #{tpu_custom_call.1} parent=5 // pred_fallthru
        _
    $region6: #{tpu_custom_call.1} parent=1 // loop_footer
      %s22 = sadd.s32 1, %s18
    $region7: #{tpu_custom_call.1} parent=1 // loop_footer_branch
      %17 = sbr.rel target = $region3
    $region8: #{tpu_custom_call.1} parent=1 // loop_exit
      _
    %832 = vsyncpa [#allocation3], 1
    %s833 = scalar_lea.sflag [#allocation3], 1
    %834 = vsyncpa %s833, 1
    %835 = vsyncpa [#allocation6], 1
    %836 = vsyncpa [#allocation4], 1
    %s837 = scalar_lea.sflag [#allocation4], 1
    %838 = vsyncpa %s837, 1

</llo_original>
